<compile_context>
chip_gen: v6e
topology: v6e:2x2x1
jax: 0.10.0
libtpu: 0.0.40
codegen_flags: <defaults>
</compile_context>

<pallas_src>
import functools
import math

import jax
import jax.numpy as jnp
from jax import lax
from jax.experimental import pallas as pl
from jax.experimental.pallas import tpu as pltpu

_LANE = 128
_SUBLANE = 8
_CHUNK_ROWS = 64      # (64,128) f32 chunk = 8 vregs per operand, processed fully in-register
_ROW_TILE = 4096      # (4096,128) f32 block = 2 MiB per input per pipeline buffer
_NUM_CORES = 2        # leading "parallel" grid axis (megacore); harmless on 1-TC chips


def _metric_sums_kernel(pr_ref, gt_ref, part_ref, *,
                        logit_t, valid_rows, row_tile, steps_per_core):
    """Streams one (row_tile,128) block; folds [tp, sum_pr, sum_gt, eq] into a resident
    (1,4,8,128) per-core accumulator block."""
    c = pl.program_id(0)   # "parallel" core axis
    i = pl.program_id(1)   # "arbitrary" reduction axis

    @pl.when(i == 0)
    def _init():
        part_ref[...] = jnp.zeros_like(part_ref)

    # Unclamped logical block index: the clamped duplicate tail step of the second core
    # lands here with zero valid rows, so it contributes nothing.
    blk = c * steps_per_core + i
    rows_valid = jnp.clip(valid_rows - blk * row_tile, 0, row_tile)   # int32 scalar

    n_chunks = row_tile // _CHUNK_ROWS
    unroll = 4 if n_chunks % 4 == 0 else 1
    row_iota = lax.broadcasted_iota(jnp.int32, (_CHUNK_ROWS, 1), 0)   # hoisted constant

    def fold(x):
        # (CHUNK_ROWS,128) -> (8,128): reshape keeps the native (8,128) vreg tiling,
        # sum over axis 0 is pure VPU vreg adds (no XLU).
        return x.reshape(_CHUNK_ROWS // _SUBLANE, _SUBLANE, _LANE).sum(axis=0)

    def body(j, carry):
        tp_a, spr_a, sgt_a, eq_a = carry
        r0 = pl.multiple_of(j * _CHUNK_ROWS, _CHUNK_ROWS)
        # Per-chunk loads straight into vregs; casts happen in-register (no f32 VMEM
        # temporaries, no full-block intermediates).
        prf = pr_ref[pl.ds(r0, _CHUNK_ROWS), :].astype(jnp.float32)
        gtf = gt_ref[pl.ds(r0, _CHUNK_ROWS), :].astype(jnp.float32)
        # Row-only validity mask: only matters for the single partial block and the
        # duplicate block.  jnp.where keeps VMEM garbage (even NaN) out of the sums.
        valid = row_iota < (rows_valid - r0)                  # (CHUNK_ROWS,1) bool
        prb = (prf > logit_t) & valid                         # == sigmoid(pr) > threshold
        prb_f = prb.astype(jnp.float32)
        gt_m = jnp.where(valid, gtf, 0.0)
        eq = jnp.where(valid & (prb_f == gt_m), 1.0, 0.0)
        tp_a = tp_a + fold(jnp.where(prb, gt_m, 0.0))
        spr_a = spr_a + fold(prb_f)
        sgt_a = sgt_a + fold(gt_m)
        eq_a = eq_a + fold(eq)
        return tp_a, spr_a, sgt_a, eq_a

    zero = jnp.zeros((_SUBLANE, _LANE), jnp.float32)
    tp_a, spr_a, sgt_a, eq_a = lax.fori_loop(
        0, n_chunks, body, (zero, zero, zero, zero), unroll=unroll)

    part_ref[0, 0] += tp_a
    part_ref[0, 1] += spr_a
    part_ref[0, 2] += sgt_a
    part_ref[0, 3] += eq_a


def _partial_sums_jax(pr_flat, gt_flat, logit_t):
    """Plain-JAX [tp, sum_pr, sum_gt, eq] for tiny inputs / sub-128-element tails."""
    prf = pr_flat.astype(jnp.float32)
    gtf = gt_flat.astype(jnp.float32)
    prb = (prf > logit_t).astype(jnp.float32)
    return (jnp.sum(prb * gtf), jnp.sum(prb), jnp.sum(gtf),
            jnp.sum((prb == gtf).astype(jnp.float32)))


def accuracy_metric(pr, gt, metric="all", threshold=0.5, eps=1e-7):
    """JAX/Pallas equivalent of AccuracyMetric.forward(pr, gt, metric)."""
    n_true = int(pr.size)
    assert int(gt.size) == n_true and n_true > 0
    # Keeps all row-index math < 2**24 and per-accumulator-cell counts < 2**21 (exact f32).
    assert n_true < 2 ** 31
    # sigmoid is strictly monotonic: sigmoid(x) > t  <=>  x > log(t / (1 - t)).
    logit_t = float(math.log(threshold / (1.0 - threshold)))

    flat_pr = pr.reshape(-1)   # free bitcast; native dtype all the way to the kernel
    flat_gt = gt.reshape(-1)

    rows_main = n_true // _LANE
    use_kernel = rows_main >= _CHUNK_ROWS          # tiny inputs: pure JAX is cheaper
    n_main = rows_main * _LANE if use_kernel else 0

    tp = spr = sgt = eq = jnp.float32(0.0)

    if use_kernel:
        if n_main == n_true:
            pr2 = flat_pr.reshape(rows_main, _LANE)    # layout-preserving view, no copy
            gt2 = flat_gt.reshape(rows_main, _LANE)
        else:
            # Rare (n % 128 != 0): prefix slice may materialize a copy of the main body,
            # but there is no full-array pad, the <128-element tail is reduced in JAX
            # below, and the in-kernel mask stays row-only.
            pr2 = flat_pr[:n_main].reshape(rows_main, _LANE)
            gt2 = flat_gt[:n_main].reshape(rows_main, _LANE)

        # row_tile: multiple of _CHUNK_ROWS and never larger than the array's row count.
        row_tile = min(_ROW_TILE, (rows_main // _CHUNK_ROWS) * _CHUNK_ROWS)
        total_blocks = pl.cdiv(rows_main, row_tile)
        # Single block of work -> skip the duplicate clamped tail block and the second
        # accumulator plane entirely.
        num_cores = _NUM_CORES if total_blocks > 1 else 1
        steps_per_core = pl.cdiv(total_blocks, num_cores)

        kernel = functools.partial(
            _metric_sums_kernel,
            logit_t=logit_t, valid_rows=rows_main,
            row_tile=row_tile, steps_per_core=steps_per_core)

        def in_map(c, i):
            # Clamp the (possibly dangling) last step of the second core; its block is
            # fully masked in-kernel, so the duplicate read is harmless.
            return (jnp.minimum(c * steps_per_core + i, total_blocks - 1), 0)

        bytes_accessed = n_main * (jnp.dtype(pr.dtype).itemsize
                                   + jnp.dtype(gt.dtype).itemsize)
        cost = pl.CostEstimate(flops=10 * n_main, transcendentals=0,
                               bytes_accessed=bytes_accessed)

        parts = pl.pallas_call(
            kernel,
            out_shape=jax.ShapeDtypeStruct((num_cores, 4, _SUBLANE, _LANE), jnp.float32),
            grid_spec=pltpu.PrefetchScalarGridSpec(
                num_scalar_prefetch=0,
                grid=(num_cores, steps_per_core),
                in_specs=[pl.BlockSpec((row_tile, _LANE), in_map),
                          pl.BlockSpec((row_tile, _LANE), in_map)],
                out_specs=pl.BlockSpec((1, 4, _SUBLANE, _LANE),
                                       lambda c, i: (c, 0, 0, 0)),
            ),
            compiler_params=pltpu.CompilerParams(
                dimension_semantics=("parallel", "arbitrary")),
            cost_estimate=cost,
        )(pr2, gt2)

        # Tiny (num_cores,4,8,128) partial tensor; finish the reduction in plain JAX.
        sums = jnp.sum(parts, axis=(0, 2, 3))
        tp, spr, sgt, eq = sums[0], sums[1], sums[2], sums[3]

    if n_main != n_true:
        t = _partial_sums_jax(flat_pr[n_main:], flat_gt[n_main:], logit_t)
        tp, spr, sgt, eq = tp + t[0], spr + t[1], sgt + t[2], eq + t[3]

    fp = spr - tp
    fn = sgt - tp

    accuracy = eq / jnp.float32(n_true)
    iou = (tp + eps) / (sgt + spr - tp + eps)
    f1 = (2.0 * tp + eps) / (2.0 * tp + fn + fp + eps)
    recall = (tp + eps) / (tp + fn + eps)
    precision = (tp + eps) / (tp + fp + eps)

    # Branching (including the 'prec' -> 'rec' key and 'recal' spelling) intentionally
    # replicates the original PyTorch module.
    if metric == "accuracy":
        return {"accuracy": accuracy}
    elif metric == "iou":
        return {"iou": iou}
    elif metric == "f1":
        return {"f1": f1}
    elif metric == "recal":
        return {"recal": recall}
    elif metric == "prec":
        return {"rec": precision}
    elif metric == "all":
        return {"acc": accuracy, "iou": iou, "f1s": f1,
                "rec": recall, "pre": precision}
    else:
        raise ValueError("the specified accuracy type is not known")


def _reference(pr, gt, threshold=0.5, eps=1e-7):
    """Pure-JAX reference of the smp metric math (for validation)."""
    pr_bin = (jax.nn.sigmoid(pr.astype(jnp.float32)) > threshold).astype(jnp.float32)
    gtf = gt.astype(jnp.float32)
    tp = jnp.sum(pr_bin * gtf)
    sum_pr = jnp.sum(pr_bin)
    sum_gt = jnp.sum(gtf)
    eq = jnp.sum((pr_bin == gtf).astype(jnp.float32))
    fp, fn = sum_pr - tp, sum_gt - tp
    return {
        "acc": eq / pr.size,
        "iou": (tp + eps) / (sum_gt + sum_pr - tp + eps),
        "f1s": (2 * tp + eps) / (2 * tp + fn + fp + eps),
        "rec": (tp + eps) / (tp + fn + eps),
        "pre": (tp + eps) / (tp + fp + eps),
    }


def _check(out, ref, tag):
    for k in out:
        a, b = float(out[k]), float(ref[k])
        assert abs(a - b) < 1e-5, (tag, k, a, b)


if __name__ == "__main__":
    key = jax.random.PRNGKey(0)
    ks = jax.random.split(key, 6)

    # Case 1: tiny NCHW (2, 1, 16, 16) logits/mask — pure-JAX small-input path.
    pr_a = jax.random.normal(ks[0], (2, 1, 16, 16), dtype=jnp.float32)
    gt_a = (jax.random.uniform(ks[1], (2, 1, 16, 16)) > 0.5).astype(jnp.float32)
    out_a = accuracy_metric(pr_a, gt_a, metric="all")
    out_a = jax.tree_util.tree_map(jax.block_until_ready, out_a)
    _check(out_a, _reference(pr_a, gt_a), "case1")

    # Case 2: non-128-multiple size + non-default threshold — kernel path with a partial
    # block, a partial chunk, a <128-element JAX tail and the 2-wide core axis.
    pr_b = jax.random.normal(ks[2], (2, 4, 57, 101), dtype=jnp.float32)
    gt_b = (jax.random.uniform(ks[3], (2, 4, 57, 101)) > 0.5).astype(jnp.float32)
    out_b = accuracy_metric(pr_b, gt_b, metric="all", threshold=0.3)
    out_b = jax.tree_util.tree_map(jax.block_until_ready, out_b)
    _check(out_b, _reference(pr_b, gt_b, threshold=0.3), "case2")

    # Case 3: multi-block (3 x 4096-row blocks, last one partial) — exercises full blocks,
    # the partial-block row mask and the clamped duplicate tail step of the second core.
    pr_c = jax.random.normal(ks[4], (2, 1, 768, 1000), dtype=jnp.float32)
    gt_c = (jax.random.uniform(ks[5], (2, 1, 768, 1000)) > 0.5).astype(jnp.float32)
    out_c = accuracy_metric(pr_c, gt_c, metric="all")
    out_c = jax.tree_util.tree_map(jax.block_until_ready, out_c)
    _check(out_c, _reference(pr_c, gt_c), "case3")

    print("KERNEL_OK")
</pallas_src>

<mosaic_0001>
module attributes {stable_mosaic.version = 11 : i64} {
  func.func @_metric_sums_kernel(%arg0: i32, %arg1: i32, %arg2: memref<320x128xf32, #tpu.memory_space<vmem>>, %arg3: memref<320x128xf32, #tpu.memory_space<vmem>>, %arg4: memref<1x4x8x128xf32, #tpu.memory_space<vmem>>) attributes {dimension_semantics = [#tpu.dimension_semantics<parallel>, #tpu.dimension_semantics<arbitrary>], iteration_bounds = array<i64: 2, 1>, scalar_prefetch = 0 : i64, scratch_operands = 0 : i64, tpu.core_type = #tpu.core_type<tc>, window_params = [{transform_indices = @transform_0, window_bounds = array<i64: 320, 128>}, {transform_indices = @transform_1, window_bounds = array<i64: 320, 128>}, {transform_indices = @transform_2, window_bounds = array<i64: 1, 4, 8, 128>}]} {
    %c0_i32 = arith.constant 0 : i32
    %0 = arith.cmpi eq, %arg1, %c0_i32 : i32
    %1 = arith.extui %0 : i1 to i32
    %c0_i32_0 = arith.constant 0 : i32
    %2 = arith.cmpi ne, %1, %c0_i32_0 : i32
    scf.if %2 {
      %cst_34 = arith.constant 0.000000e+00 : f32
      %37 = vector.broadcast %cst_34 : f32 to vector<1x4x8x128xf32>
      %c0_35 = arith.constant 0 : index
      %c0_36 = arith.constant 0 : index
      %c0_37 = arith.constant 0 : index
      %c0_38 = arith.constant 0 : index
      %38 = vector.load %arg4[%c0_35, %c0_36, %c0_37, %c0_38] : memref<1x4x8x128xf32, #tpu.memory_space<vmem>>, vector<1x4x8x128xf32>
      tpu.vector_store %arg4[%c0_35, %c0_36, %c0_37, %c0_38], %37 {strides = array<i32>} : memref<1x4x8x128xf32, #tpu.memory_space<vmem>>, vector<1x4x8x128xf32>,
    } else {
    }
    %c1_i32 = arith.constant 1 : i32
    %3 = arith.muli %arg0, %c1_i32 : i32
    %4 = arith.addi %3, %arg1 : i32
    %c320_i32 = arith.constant 320 : i32
    %5 = arith.muli %4, %c320_i32 : i32
    %c359_i32 = arith.constant 359 : i32
    %6 = arith.subi %c359_i32, %5 : i32
    %c0_i32_1 = arith.constant 0 : i32
    %c320_i32_2 = arith.constant 320 : i32
    %7 = arith.maxsi %c0_i32_1, %6 : i32
    %8 = arith.minsi %c320_i32_2, %7 : i32
    %9 = tpu.iota {dimensions = array<i32: 0>} : vector<64x1xi32>
    %cst = arith.constant 0.000000e+00 : f32
    %10 = vector.broadcast %cst : f32 to vector<8x128xf32>
    %c0_i32_3 = arith.constant 0 : i32
    %c5_i32 = arith.constant 5 : i32
    %11 = arith.addi %c0_i32_3, %c5_i32 : i32
    %c1_i32_4 = arith.constant 1 : i32
    %12:4 = scf.for %arg5 = %c0_i32_3 to %11 step %c1_i32_4 iter_args(%arg6 = %10, %arg7 = %10, %arg8 = %10, %arg9 = %10) -> (vector<8x128xf32>, vector<8x128xf32>, vector<8x128xf32>, vector<8x128xf32>)  : i32 {
      %c64_i32 = arith.constant 64 : i32
      %37 = arith.muli %arg5, %c64_i32 : i32
      %38 = tpu.assume_multiple %37, 64 : i32
      %39 = arith.index_cast %38 : i32 to index
      %c0_34 = arith.constant 0 : index
      %40 = vector.load %arg2[%39, %c0_34] : memref<320x128xf32, #tpu.memory_space<vmem>>, vector<64x128xf32>
      %41 = arith.index_cast %38 : i32 to index
      %c0_35 = arith.constant 0 : index
      %42 = vector.load %arg3[%41, %c0_35] : memref<320x128xf32, #tpu.memory_space<vmem>>, vector<64x128xf32>
      %43 = arith.subi %8, %38 : i32
      %44 = vector.broadcast %43 : i32 to vector<64x1xi32>
      %45 = arith.cmpi slt, %9, %44 : vector<64x1xi32>
      %cst_36 = arith.constant -0.847297847 : f32
      %46 = vector.broadcast %cst_36 : f32 to vector<64x128xf32>
      %47 = arith.cmpf ogt, %40, %46 : vector<64x128xf32>
      %48 = vector.broadcast %45 : vector<64x1xi1> to vector<64x128xi1>
      %49 = arith.andi %47, %48 : vector<64x128xi1>
      %50 = arith.extui %49 : vector<64x128xi1> to vector<64x128xi32>
      %51 = arith.sitofp %50 : vector<64x128xi32> to vector<64x128xf32>
      %cst_37 = arith.constant 0.000000e+00 : f32
      %52 = vector.shape_cast %45 : vector<64x1xi1> to vector<64x1xi1>
      %53 = vector.broadcast %52 : vector<64x1xi1> to vector<64x128xi1>
      %54 = vector.broadcast %cst_37 : f32 to vector<64x128xf32>
      %55 = arith.select %53, %42, %54 : vector<64x128xi1>, vector<64x128xf32>
      %56 = arith.cmpf oeq, %51, %55 : vector<64x128xf32>
      %57 = vector.broadcast %45 : vector<64x1xi1> to vector<64x128xi1>
      %58 = arith.andi %57, %56 : vector<64x128xi1>
      %cst_38 = arith.constant 1.000000e+00 : f32
      %cst_39 = arith.constant 0.000000e+00 : f32
      %59 = vector.broadcast %cst_38 : f32 to vector<64x128xf32>
      %60 = vector.broadcast %cst_39 : f32 to vector<64x128xf32>
      %61 = arith.select %58, %59, %60 : vector<64x128xi1>, vector<64x128xf32>
      %cst_40 = arith.constant 0.000000e+00 : f32
      %62 = vector.broadcast %cst_40 : f32 to vector<64x128xf32>
      %63 = arith.select %49, %55, %62 : vector<64x128xi1>, vector<64x128xf32>
      %64 = vector.shape_cast %63 : vector<64x128xf32> to vector<8x8x128xf32>
      %cst_41 = arith.constant dense<0.000000e+00> : vector<8x128xf32>
      %65 = vector.multi_reduction <add>, %64, %cst_41 [0] : vector<8x8x128xf32> to vector<8x128xf32>
      %66 = arith.addf %arg6, %65 : vector<8x128xf32>
      %67 = vector.shape_cast %51 : vector<64x128xf32> to vector<8x8x128xf32>
      %cst_42 = arith.constant dense<0.000000e+00> : vector<8x128xf32>
      %68 = vector.multi_reduction <add>, %67, %cst_42 [0] : vector<8x8x128xf32> to vector<8x128xf32>
      %69 = arith.addf %arg7, %68 : vector<8x128xf32>
      %70 = vector.shape_cast %55 : vector<64x128xf32> to vector<8x8x128xf32>
      %cst_43 = arith.constant dense<0.000000e+00> : vector<8x128xf32>
      %71 = vector.multi_reduction <add>, %70, %cst_43 [0] : vector<8x8x128xf32> to vector<8x128xf32>
      %72 = arith.addf %arg8, %71 : vector<8x128xf32>
      %73 = vector.shape_cast %61 : vector<64x128xf32> to vector<8x8x128xf32>
      %cst_44 = arith.constant dense<0.000000e+00> : vector<8x128xf32>
      %74 = vector.multi_reduction <add>, %73, %cst_44 [0] : vector<8x8x128xf32> to vector<8x128xf32>
      %75 = arith.addf %arg9, %74 : vector<8x128xf32>
      scf.yield %66, %69, %72, %75 : vector<8x128xf32>, vector<8x128xf32>, vector<8x128xf32>, vector<8x128xf32>
    }
    %c5_i32_5 = arith.constant 5 : i32
    %c0 = arith.constant 0 : index
    %c0_6 = arith.constant 0 : index
    %c0_7 = arith.constant 0 : index
    %c0_8 = arith.constant 0 : index
    %13 = vector.load %arg4[%c0, %c0_6, %c0_7, %c0_8] : memref<1x4x8x128xf32, #tpu.memory_space<vmem>>, vector<1x1x8x128xf32>
    %14 = vector.shape_cast %13 : vector<1x1x8x128xf32> to vector<8x128xf32>
    %15 = arith.addf %14, %12#0 : vector<8x128xf32>
    %c0_9 = arith.constant 0 : index
    %c0_10 = arith.constant 0 : index
    %c0_11 = arith.constant 0 : index
    %c0_12 = arith.constant 0 : index
    %16 = vector.load %arg4[%c0_9, %c0_10, %c0_11, %c0_12] : memref<1x4x8x128xf32, #tpu.memory_space<vmem>>, vector<1x1x8x128xf32>
    %17 = vector.shape_cast %16 : vector<1x1x8x128xf32> to vector<8x128xf32>
    %18 = vector.shape_cast %15 : vector<8x128xf32> to vector<1x1x8x128xf32>
    tpu.vector_store %arg4[%c0_9, %c0_10, %c0_11, %c0_12], %18 {strides = array<i32>} : memref<1x4x8x128xf32, #tpu.memory_space<vmem>>, vector<1x1x8x128xf32>,
    %c0_13 = arith.constant 0 : index
    %c1 = arith.constant 1 : index
    %c0_14 = arith.constant 0 : index
    %c0_15 = arith.constant 0 : index
    %19 = vector.load %arg4[%c0_13, %c1, %c0_14, %c0_15] : memref<1x4x8x128xf32, #tpu.memory_space<vmem>>, vector<1x1x8x128xf32>
    %20 = vector.shape_cast %19 : vector<1x1x8x128xf32> to vector<8x128xf32>
    %21 = arith.addf %20, %12#1 : vector<8x128xf32>
    %c0_16 = arith.constant 0 : index
    %c1_17 = arith.constant 1 : index
    %c0_18 = arith.constant 0 : index
    %c0_19 = arith.constant 0 : index
    %22 = vector.load %arg4[%c0_16, %c1_17, %c0_18, %c0_19] : memref<1x4x8x128xf32, #tpu.memory_space<vmem>>, vector<1x1x8x128xf32>
    %23 = vector.shape_cast %22 : vector<1x1x8x128xf32> to vector<8x128xf32>
    %24 = vector.shape_cast %21 : vector<8x128xf32> to vector<1x1x8x128xf32>
    tpu.vector_store %arg4[%c0_16, %c1_17, %c0_18, %c0_19], %24 {strides = array<i32>} : memref<1x4x8x128xf32, #tpu.memory_space<vmem>>, vector<1x1x8x128xf32>,
    %c0_20 = arith.constant 0 : index
    %c2 = arith.constant 2 : index
    %c0_21 = arith.constant 0 : index
    %c0_22 = arith.constant 0 : index
    %25 = vector.load %arg4[%c0_20, %c2, %c0_21, %c0_22] : memref<1x4x8x128xf32, #tpu.memory_space<vmem>>, vector<1x1x8x128xf32>
    %26 = vector.shape_cast %25 : vector<1x1x8x128xf32> to vector<8x128xf32>
    %27 = arith.addf %26, %12#2 : vector<8x128xf32>
    %c0_23 = arith.constant 0 : index
    %c2_24 = arith.constant 2 : index
    %c0_25 = arith.constant 0 : index
    %c0_26 = arith.constant 0 : index
    %28 = vector.load %arg4[%c0_23, %c2_24, %c0_25, %c0_26] : memref<1x4x8x128xf32, #tpu.memory_space<vmem>>, vector<1x1x8x128xf32>
    %29 = vector.shape_cast %28 : vector<1x1x8x128xf32> to vector<8x128xf32>
    %30 = vector.shape_cast %27 : vector<8x128xf32> to vector<1x1x8x128xf32>
    tpu.vector_store %arg4[%c0_23, %c2_24, %c0_25, %c0_26], %30 {strides = array<i32>} : memref<1x4x8x128xf32, #tpu.memory_space<vmem>>, vector<1x1x8x128xf32>,
    %c0_27 = arith.constant 0 : index
    %c3 = arith.constant 3 : index
    %c0_28 = arith.constant 0 : index
    %c0_29 = arith.constant 0 : index
    %31 = vector.load %arg4[%c0_27, %c3, %c0_28, %c0_29] : memref<1x4x8x128xf32, #tpu.memory_space<vmem>>, vector<1x1x8x128xf32>
    %32 = vector.shape_cast %31 : vector<1x1x8x128xf32> to vector<8x128xf32>
    %33 = arith.addf %32, %12#3 : vector<8x128xf32>
    %c0_30 = arith.constant 0 : index
    %c3_31 = arith.constant 3 : index
    %c0_32 = arith.constant 0 : index
    %c0_33 = arith.constant 0 : index
    %34 = vector.load %arg4[%c0_30, %c3_31, %c0_32, %c0_33] : memref<1x4x8x128xf32, #tpu.memory_space<vmem>>, vector<1x1x8x128xf32>
    %35 = vector.shape_cast %34 : vector<1x1x8x128xf32> to vector<8x128xf32>
    %36 = vector.shape_cast %33 : vector<8x128xf32> to vector<1x1x8x128xf32>
    tpu.vector_store %arg4[%c0_30, %c3_31, %c0_32, %c0_33], %36 {strides = array<i32>} : memref<1x4x8x128xf32, #tpu.memory_space<vmem>>, vector<1x1x8x128xf32>,
    return
  }
  func.func @transform_0(%arg0: i32, %arg1: i32) -> (i32, i32) {
    %c1_i32 = arith.constant 1 : i32
    %0 = arith.muli %arg0, %c1_i32 : i32
    %1 = arith.addi %0, %arg1 : i32
    %c1_i32_0 = arith.constant 1 : i32
    %2 = arith.minsi %1, %c1_i32_0 : i32
    %c0_i32 = arith.constant 0 : i32
    %c0_i32_1 = arith.constant 0 : i32
    return %2, %c0_i32 : i32, i32
  }
  func.func @transform_1(%arg0: i32, %arg1: i32) -> (i32, i32) {
    %c1_i32 = arith.constant 1 : i32
    %0 = arith.muli %arg0, %c1_i32 : i32
    %1 = arith.addi %0, %arg1 : i32
    %c1_i32_0 = arith.constant 1 : i32
    %2 = arith.minsi %1, %c1_i32_0 : i32
    %c0_i32 = arith.constant 0 : i32
    %c0_i32_1 = arith.constant 0 : i32
    return %2, %c0_i32 : i32, i32
  }
  func.func @transform_2(%arg0: i32, %arg1: i32) -> (i32, i32, i32, i32) {
    %c0_i32 = arith.constant 0 : i32
    %c0_i32_0 = arith.constant 0 : i32
    %c0_i32_1 = arith.constant 0 : i32
    %c0_i32_2 = arith.constant 0 : i32
    return %arg0, %c0_i32, %c0_i32_0, %c0_i32_1 : i32, i32, i32, i32
  }
}

</mosaic_0001>

<llo_original>
// kernel: tpu_custom_call.1
$region0: #{tpu_custom_call.1}
  #allocation0 [shape = 'u32[]', space=smem, size = 0x4, offset = 0x4, fixed_abs, tag = 'smem constant byte address 0x4 - core index']
  #allocation1 [shape = 'u32[144,128]{1,0:T(1,128)}', space=vmem, size = 0x12000, scoped, tag = 'internal scratch']
  %s0 = inlined_call_operand.hbm [shape: f32[359,128], index: 0, kind: input, shape index: {}]
  %s1 = inlined_call_operand.hbm [shape: f32[359,128], index: 1, kind: input, shape index: {}]
  %s2 = inlined_call_operand.hbm [shape: f32[2,4,8,128], index: 2, kind: output, shape index: {}]
  %s3 = sld [smem:[#allocation0]]
  $region60: #{tpu_custom_call.1} parent=0
    _
  %s5 = ssub.s32 1, %s3
  %s6 = scalar_select 0, %s5, %s3
  $region1: #{tpu_custom_call.1} parent=0
    #allocation2 [shape = 'u8[327680]{0}', space=vmem, size = 0x50000, scoped, tag = 'input window, operand 0']
    #allocation3 [shape = 's32[2]{0}', space=sflag, size = 0x8, scoped, tag = 'scoped memory for tpu_custom_call.1']
    #allocation4 [shape = 's32[2]{0}', space=sflag, size = 0x8, scoped, tag = 'scoped memory for tpu_custom_call.1']
    #allocation5 [shape = 'u8[327680]{0}', space=vmem, size = 0x50000, scoped, tag = 'input window, operand 1']
    #allocation6 [shape = 's32[2]{0}', space=sflag, size = 0x8, scoped, tag = 'scoped memory for tpu_custom_call.1']
    #allocation7 [shape = 'u8[32768]{0}', space=vmem, size = 0x8000, scoped, tag = 'output window, operand 0']
    %7 = vsyncpa [#allocation3], 0
    %s8 = scalar_lea.sflag [#allocation3], 1
    %9 = vsyncpa %s8, 0
    %10 = vsyncpa [#allocation6], 0
    %s11 = scalar_lea.sflag [#allocation6], 1
    %12 = vsyncpa %s11, 0
    %13 = vsyncpa [#allocation4], 0
    %s14 = scalar_lea.sflag [#allocation4], 1
    %15 = vsyncpa %s14, 0
    loop: start=0, step=1, limit=4
    $region2: #{tpu_custom_call.1} parent=1 // loop_pre_header
      _
    $region3: #{tpu_custom_call.1} parent=1 // loop_header
      %s17 = sphi 0, %s21
      %p18 = scmp.ge.s32.totalorder %s17, 4
      %s24 = sphi 0, %s36
      %s25 = sphi 0, %s32
      %s26 = sphi 0, %s24
      %s27 = sphi 0, %s25
      %s28 = sphi 0, %s26
      %s29 = sphi 0, %s27
      %s45 = sphi 0, %s47
      %s48 = sphi 0, %s45
      %s49 = sphi 0, %s48
      %s65 = sphi 0, %s49
      %s77 = sphi 0, %s79
      %s80 = sphi 0, %s77
      %s81 = sphi 0, %s80
      %s97 = sphi 0, %s81
      %s103 = sphi 0, %s105
      %s106 = sphi 0, %s103
      %s107 = sphi 0, %s106
      %s123 = sphi 0, %s107
    $region4: #{tpu_custom_call.1} parent=1 // loop_header_branch
      %20 = sbr.rel (%p18) target = $region8
    $region5: #{tpu_custom_call.1} parent=1 // loop_body
      %s22 = ssub.s32 %s17, 1
      %s23 = ssub.s32 %s17, 2
      %s30 = sadd.s32 1, %s25
      %p31 = scmp.ge.s32.totalorder %s30, 1
      %s32 = scalar_select %p31, 0, %s30
      %s33 = sadd.s32 1, %s24
      %s34 = scalar_select %p31, %s33, %s24
      %p35 = scmp.ge.s32.totalorder %s34, 2
      %s36 = scalar_select %p35, 0, %s34
      %s37 = sadd.s32 %s24, %s25
      %p38 = scmp.lt.s32.totalorder %s37, 1
      %s39 = scalar_select %p38, %s37, 1
      %s40 = sadd.s32 %s36, %s32
      %p41 = scmp.lt.s32.totalorder %s40, 1
      %s42 = scalar_select %p41, %s40, 1
      %s43 = ssub.s32 %s39, %s42
      %p44 = scmp.eq.s32.totalorder %s43, 0
      %s46 = sadd.s32 %s45, 1
      %s47 = scalar_select %p44, %s45, %s46
      %p50 = pneg %p44
      %p51 = scmp.eq.s32.totalorder %s17, 1
      %p52 = por %p50, %p51
      %p53 = scmp.ne.s32.totalorder %s45, %s48
      %p54 = scmp.eq.s32.totalorder %s17, 0
      %p55 = por %p53, %p54
      %p56 = scmp.ne.s32.totalorder %s45, %s48
      %p57 = scmp.eq.s32.totalorder %s22, 1
      %p58 = por %p56, %p57
      %p59 = scmp.ne.s32.totalorder %s48, %s49
      %p60 = scmp.eq.s32.totalorder %s22, 0
      %p61 = por %p59, %p60
      %p62 = scmp.ne.s32.totalorder %s48, %s49
      %p63 = scmp.eq.s32.totalorder %s23, 1
      %p64 = por %p62, %p63
      %p66 = scmp.ne.s32.totalorder %s49, %s65
      %p67 = scmp.eq.s32.totalorder %s23, 0
      %p68 = por %p66, %p67
      %s69 = sadd.s32 %s24, %s25
      %p70 = scmp.lt.s32.totalorder %s69, 1
      %s71 = scalar_select %p70, %s69, 1
      %s72 = sadd.s32 %s36, %s32
      %p73 = scmp.lt.s32.totalorder %s72, 1
      %s74 = scalar_select %p73, %s72, 1
      %s75 = ssub.s32 %s71, %s74
      %p76 = scmp.eq.s32.totalorder %s75, 0
      %s78 = sadd.s32 %s77, 1
      %s79 = scalar_select %p76, %s77, %s78
      %p82 = pneg %p76
      %p83 = scmp.eq.s32.totalorder %s17, 1
      %p84 = por %p82, %p83
      %p85 = scmp.ne.s32.totalorder %s77, %s80
      %p86 = scmp.eq.s32.totalorder %s17, 0
      %p87 = por %p85, %p86
      %p88 = scmp.ne.s32.totalorder %s77, %s80
      %p89 = scmp.eq.s32.totalorder %s22, 1
      %p90 = por %p88, %p89
      %p91 = scmp.ne.s32.totalorder %s80, %s81
      %p92 = scmp.eq.s32.totalorder %s22, 0
      %p93 = por %p91, %p92
      %p94 = scmp.ne.s32.totalorder %s80, %s81
      %p95 = scmp.eq.s32.totalorder %s23, 1
      %p96 = por %p94, %p95
      %p98 = scmp.ne.s32.totalorder %s81, %s97
      %p99 = scmp.eq.s32.totalorder %s23, 0
      %p100 = por %p98, %p99
      %s101 = ssub.s32 %s24, %s36
      %p102 = scmp.eq.s32.totalorder %s101, 0
      %s104 = sadd.s32 %s103, 1
      %s105 = scalar_select %p102, %s103, %s104
      %p108 = pneg %p102
      %p109 = scmp.eq.s32.totalorder %s17, 1
      %p110 = por %p108, %p109
      %p111 = scmp.ne.s32.totalorder %s103, %s106
      %p112 = scmp.eq.s32.totalorder %s17, 0
      %p113 = por %p111, %p112
      %p114 = scmp.ne.s32.totalorder %s103, %s106
      %p115 = scmp.eq.s32.totalorder %s22, 1
      %p116 = por %p114, %p115
      %p117 = scmp.ne.s32.totalorder %s106, %s107
      %p118 = scmp.eq.s32.totalorder %s22, 0
      %p119 = por %p117, %p118
      %p120 = scmp.ne.s32.totalorder %s106, %s107
      %p121 = scmp.eq.s32.totalorder %s23, 1
      %p122 = por %p120, %p121
      %p124 = scmp.ne.s32.totalorder %s107, %s123
      %p125 = scmp.eq.s32.totalorder %s23, 0
      %p126 = por %p124, %p125
      %p127 = scmp.le.s32.totalorder 1, %s17
      %p128 = scmp.lt.s32.totalorder %s17, 3
      %p129 = pnand %p127, %p128
      %p130 = pneg %p129
      // Predicated region
      $region9: #{tpu_custom_call.1} parent=5 // pred_check
        _
      $region10: #{tpu_custom_call.1} parent=5 // pred_check_branch
        %132 = sbr.rel (%p129) target = $region12
      $region11: #{tpu_custom_call.1} parent=5 // pred_region
        %s133 = ssub.s32 %s17, 1
      $region12: #{tpu_custom_call.1} parent=5 // pred_fallthru
        _
      %p134 = scmp.lt.s32.totalorder %s17, 2
      // Predicated region
      $region13: #{tpu_custom_call.1} parent=5 // pred_check
        %p135 = pneg %p134
      $region14: #{tpu_custom_call.1} parent=5 // pred_check_branch
        %137 = sbr.rel (%p135) target = $region16
      $region15: #{tpu_custom_call.1} parent=5 // pred_region
        // Predicated region
        $region17: #{tpu_custom_call.1} parent=15 // pred_check
          %p138 = pneg %p55
        $region18: #{tpu_custom_call.1} parent=15 // pred_check_branch
          %140 = sbr.rel (%p138) target = $region20
        $region19: #{tpu_custom_call.1} parent=15 // pred_region
          %s141 = sand.u32 %s45, 1
          %s142 = scalar_lea.sflag [#allocation3], %s141
          %s143 = sand.u32 %s45, 1
          %s144 = smul.addr %s143, 320
          %s145 = scalar_lea.vmem [#allocation2], %s144
          %s146 = sadd.s32 %s24, %s25
          %p147 = scmp.lt.s32.totalorder %s146, 1
          %s148 = scalar_select %p147, %s146, 1
          %s149 = smul.u32 40, %s148
          %s150 = ssub.s32 45, %s149
          %p151 = scmp.lt.s32.totalorder %s150, 40
          %s152 = scalar_select %p151, %s150, 40
          %s153 = smul.u32 128, %s152
          %s155 = ssub.s32 5120, %s153
          %156 = vsyncadd %s142, %s155
          %p157 = scmp.ne.s32.totalorder 0, %s153
          %s158 = smul.addr %s149, 128
          %s159 = scalar_lea.hbm %s0, %s158
          %s160 = smul.u32 8, %s152
          %s161 = sshll.u32 %s145, 4
          %s162 = int_to_ptr.vmem [resolvable:$true] %s161
          %s163 = sshll.u32 %s160, 4
          %167 = dma.hbm_to_vmem [thread:$0]  (%p157), %s159, %s163, %s162, %s142, 128, 128, 8
        $region20: #{tpu_custom_call.1} parent=15 // pred_fallthru
          _
        // Predicated region
        $region21: #{tpu_custom_call.1} parent=15 // pred_check
          %p168 = pneg %p87
        $region22: #{tpu_custom_call.1} parent=15 // pred_check_branch
          %170 = sbr.rel (%p168) target = $region24
        $region23: #{tpu_custom_call.1} parent=15 // pred_region
          %s171 = sand.u32 %s77, 1
          %s172 = scalar_lea.sflag [#allocation6], %s171
          %s173 = sand.u32 %s77, 1
          %s174 = smul.addr %s173, 320
          %s175 = scalar_lea.vmem [#allocation5], %s174
          %s176 = sadd.s32 %s24, %s25
          %p177 = scmp.lt.s32.totalorder %s176, 1
          %s178 = scalar_select %p177, %s176, 1
          %s179 = smul.u32 40, %s178
          %s180 = ssub.s32 45, %s179
          %p181 = scmp.lt.s32.totalorder %s180, 40
          %s182 = scalar_select %p181, %s180, 40
          %s183 = smul.u32 128, %s182
          %s185 = ssub.s32 5120, %s183
          %186 = vsyncadd %s172, %s185
          %p187 = scmp.ne.s32.totalorder 0, %s183
          %s188 = smul.addr %s179, 128
          %s189 = scalar_lea.hbm %s1, %s188
          %s190 = smul.u32 8, %s182
          %s191 = sshll.u32 %s175, 4
          %s192 = int_to_ptr.vmem [resolvable:$true] %s191
          %s193 = sshll.u32 %s190, 4
          %197 = dma.hbm_to_vmem [thread:$0]  (%p187), %s189, %s193, %s192, %s172, 128, 128, 8
        $region24: #{tpu_custom_call.1} parent=15 // pred_fallthru
          _
      $region16: #{tpu_custom_call.1} parent=5 // pred_fallthru
        _
      %p198 = scmp.le.s32.totalorder 1, %s17
      %p199 = scmp.lt.s32.totalorder %s17, 3
      %p200 = pnand %p198, %p199
      %p201 = pneg %p200
      // Predicated region
      $region25: #{tpu_custom_call.1} parent=5 // pred_check
        _
      $region26: #{tpu_custom_call.1} parent=5 // pred_check_branch
        %203 = sbr.rel (%p200) target = $region28
      $region27: #{tpu_custom_call.1} parent=5 // pred_region
        %s204 = ssub.s32 %s17, 1
        %s205 = sand.u32 %s48, 1
        %s206 = scalar_lea.sflag [#allocation3], %s205
        %s207 = sand.u32 %s48, 1
        %s208 = smul.addr %s207, 320
        %s209 = scalar_lea.vmem [#allocation2], %s208
        // Predicated region
        $region29: #{tpu_custom_call.1} parent=27 // pred_check
          %p210 = pneg %p61
        $region30: #{tpu_custom_call.1} parent=27 // pred_check_branch
          %212 = sbr.rel (%p210) target = $region32
        $region31: #{tpu_custom_call.1} parent=27 // pred_region
          %213 = dma.done %s206, 5120
        $region32: #{tpu_custom_call.1} parent=27 // pred_fallthru
          _
        %s214 = sand.u32 %s80, 1
        %s215 = scalar_lea.sflag [#allocation6], %s214
        %s216 = sand.u32 %s80, 1
        %s217 = smul.addr %s216, 320
        %s218 = scalar_lea.vmem [#allocation5], %s217
        // Predicated region
        $region33: #{tpu_custom_call.1} parent=27 // pred_check
          %p219 = pneg %p93
        $region34: #{tpu_custom_call.1} parent=27 // pred_check_branch
          %221 = sbr.rel (%p219) target = $region36
        $region35: #{tpu_custom_call.1} parent=27 // pred_region
          %222 = dma.done %s215, 5120
        $region36: #{tpu_custom_call.1} parent=27 // pred_fallthru
          _
        %s223 = sand.u32 %s48, 1
        %s224 = scalar_lea.sflag [#allocation3], %s223
        %s225 = sand.u32 %s48, 1
        %s226 = smul.addr %s225, 320
        %s227 = scalar_lea.vmem [#allocation2], %s226
        %p228 = pneg %p61
        %p229 = pneg %p58
        %s230 = sand.u32 %s80, 1
        %s231 = scalar_lea.sflag [#allocation6], %s230
        %s232 = sand.u32 %s80, 1
        %s233 = smul.addr %s232, 320
        %s234 = scalar_lea.vmem [#allocation5], %s233
        %p235 = pneg %p93
        %p236 = pneg %p90
        %p237 = pneg %p119
        %p238 = pneg %p116
        %s239 = sand.u32 %s106, 1
        %s240 = scalar_lea.sflag [#allocation4], %s239
        %s241 = sand.u32 %s106, 1
        %s242 = smul.addr %s241, 32
        %s243 = scalar_lea.vmem [#allocation7], %s242
        %s244 = sadd.s32 %s26, %s27
        %p245 = scmp.lt.s32.totalorder %s244, 1
        %s246 = scalar_select %p245, %s244, 1
        %s247 = smul.u32 40, %s246
        %s248 = ssub.s32 45, %s247
        %p249 = scmp.lt.s32.totalorder %s248, 40
        %s250 = scalar_select %p249, %s248, 40
        %s251 = smul.u32 128, %s250
        %s252 = sadd.s32 %s26, %s27
        %p253 = scmp.lt.s32.totalorder %s252, 1
        %s254 = scalar_select %p253, %s252, 1
        %s255 = smul.u32 40, %s254
        %s256 = ssub.s32 45, %s255
        %p257 = scmp.lt.s32.totalorder %s256, 40
        %s258 = scalar_select %p257, %s256, 40
        %s259 = smul.u32 128, %s258
        %p260 = scmp.eq.s32.totalorder %s27, 0
        // Predicated region
        $region37: #{tpu_custom_call.1} parent=27 // pred_check
          %p261 = pneg %p260
        $region38: #{tpu_custom_call.1} parent=27 // pred_check_branch
          %263 = sbr.rel (%p261) target = $region40
        $region39: #{tpu_custom_call.1} parent=27 // pred_region
          %264 = vst [vmem:[%s243] sm:$0xff] 0.0
          %265 = vst [vmem:[%s243 + $0x8] sm:$0xff] 0.0
          %266 = vst [vmem:[%s243 + $0x10] sm:$0xff] 0.0
          %267 = vst [vmem:[%s243 + $0x18] sm:$0xff] 0.0
        $region40: #{tpu_custom_call.1} parent=27 // pred_fallthru
          _
        %s268 = sadd.s32 %s26, %s27
        %s269 = smul.u32 %s268, 320
        %s270 = ssub.s32 359, %s269
        %p271 = scmp.gt.s32.totalorder %s270, 0
        %s272 = scalar_select %p271, %s270, 0
        %p273 = scmp.lt.s32.totalorder %s272, 320
        %s274 = scalar_select %p273, %s272, 320
        %v275 = vlaneseq
        %v276 = vshrl.u32 %v275, 7
        %v277 = vadd.s32 %v276, 8
        %v278 = vadd.s32 %v276, 16
        %v279 = vadd.s32 %v276, 24
        %v280 = vadd.s32 %v276, 32
        %v281 = vadd.s32 %v276, 40
        %v282 = vadd.s32 %v276, 48
        %v283 = vadd.s32 %v276, 56
        loop: start=0, step=1, limit=5
        $region41: #{tpu_custom_call.1} parent=27 // loop_pre_header
          _
        $region42: #{tpu_custom_call.1} parent=27 // loop_header
          %s285 = sphi 0, %s289
          %p286 = scmp.ge.s32.totalorder %s285, 5
          %v290 = vphi 0.0, %v418
          %v291 = vphi 0.0, %v426
          %v292 = vphi 0.0, %v434
          %v293 = vphi 0.0, %v442
        $region43: #{tpu_custom_call.1} parent=27 // loop_header_branch
          %288 = sbr.rel (%p286) target = $region47
        $region44: #{tpu_custom_call.1} parent=27 // loop_body
          %s294 = smul.u32 %s285, 64
          %s295 = scalar_lea.vmem %s209, %s294 [#allocation2]
          %v296 = vld [vmem:[%s295] sm:$0xff]
          %v297 = vld [vmem:[%s295 + $0x8] sm:$0xff]
          %v298 = vld [vmem:[%s295 + $0x10] sm:$0xff]
          %v299 = vld [vmem:[%s295 + $0x18] sm:$0xff]
          %v300 = vld [vmem:[%s295 + $0x20] sm:$0xff]
          %v301 = vld [vmem:[%s295 + $0x28] sm:$0xff]
          %v302 = vld [vmem:[%s295 + $0x30] sm:$0xff]
          %v303 = vld [vmem:[%s295 + $0x38] sm:$0xff]
          %s304 = scalar_lea.vmem %s218, %s294 [#allocation5]
          %v305 = vld [vmem:[%s304] sm:$0xff]
          %v306 = vld [vmem:[%s304 + $0x8] sm:$0xff]
          %v307 = vld [vmem:[%s304 + $0x10] sm:$0xff]
          %v308 = vld [vmem:[%s304 + $0x18] sm:$0xff]
          %v309 = vld [vmem:[%s304 + $0x20] sm:$0xff]
          %v310 = vld [vmem:[%s304 + $0x28] sm:$0xff]
          %v311 = vld [vmem:[%s304 + $0x30] sm:$0xff]
          %v312 = vld [vmem:[%s304 + $0x38] sm:$0xff]
          %s313 = ssub.s32 %s274, %s294
          %v314 = vstv %s313
          %vm315 = vcmp.lt.s32.totalorder %v276, %v314
          %vm316 = vcmp.lt.s32.totalorder %v277, %v314
          %vm317 = vcmp.lt.s32.totalorder %v278, %v314
          %vm318 = vcmp.lt.s32.totalorder %v279, %v314
          %vm319 = vcmp.lt.s32.totalorder %v280, %v314
          %vm320 = vcmp.lt.s32.totalorder %v281, %v314
          %vm321 = vcmp.lt.s32.totalorder %v282, %v314
          %vm322 = vcmp.lt.s32.totalorder %v283, %v314
          %vm323 = vcmp.gt.f32.partialorder %v296, -0.84729785
          %vm324 = vcmp.gt.f32.partialorder %v297, -0.84729785
          %vm325 = vcmp.gt.f32.partialorder %v298, -0.84729785
          %vm326 = vcmp.gt.f32.partialorder %v299, -0.84729785
          %vm327 = vcmp.gt.f32.partialorder %v300, -0.84729785
          %vm328 = vcmp.gt.f32.partialorder %v301, -0.84729785
          %vm329 = vcmp.gt.f32.partialorder %v302, -0.84729785
          %vm330 = vcmp.gt.f32.partialorder %v303, -0.84729785
          %v331 = vsel %vm315, 1, 0
          %v332 = vsel %vm316, 1, 0
          %v333 = vsel %vm317, 1, 0
          %v334 = vsel %vm318, 1, 0
          %v335 = vsel %vm319, 1, 0
          %v336 = vsel %vm320, 1, 0
          %v337 = vsel %vm321, 1, 0
          %v338 = vsel %vm322, 1, 0
          %vm339 = vcmp.eq.s32.totalorder %v331, 1
          %vm340 = vcmp.eq.s32.totalorder %v332, 1
          %vm341 = vcmp.eq.s32.totalorder %v333, 1
          %vm342 = vcmp.eq.s32.totalorder %v334, 1
          %vm343 = vcmp.eq.s32.totalorder %v335, 1
          %vm344 = vcmp.eq.s32.totalorder %v336, 1
          %vm345 = vcmp.eq.s32.totalorder %v337, 1
          %vm346 = vcmp.eq.s32.totalorder %v338, 1
          %vm347 = vmand %vm323, %vm339
          %vm348 = vmand %vm324, %vm340
          %vm349 = vmand %vm325, %vm341
          %vm350 = vmand %vm326, %vm342
          %vm351 = vmand %vm327, %vm343
          %vm352 = vmand %vm328, %vm344
          %vm353 = vmand %vm329, %vm345
          %vm354 = vmand %vm330, %vm346
          %v355 = vsel %vm347, 1, 0
          %v356 = vsel %vm348, 1, 0
          %v357 = vsel %vm349, 1, 0
          %v358 = vsel %vm350, 1, 0
          %v359 = vsel %vm351, 1, 0
          %v360 = vsel %vm352, 1, 0
          %v361 = vsel %vm353, 1, 0
          %v362 = vsel %vm354, 1, 0
          %v363 = vcvt.s32.f32 %v355
          %v364 = vcvt.s32.f32 %v356
          %v365 = vcvt.s32.f32 %v357
          %v366 = vcvt.s32.f32 %v358
          %v367 = vcvt.s32.f32 %v359
          %v368 = vcvt.s32.f32 %v360
          %v369 = vcvt.s32.f32 %v361
          %v370 = vcvt.s32.f32 %v362
          %v371 = vsel %vm339, %v305, 0.0
          %v372 = vsel %vm340, %v306, 0.0
          %v373 = vsel %vm341, %v307, 0.0
          %v374 = vsel %vm342, %v308, 0.0
          %v375 = vsel %vm343, %v309, 0.0
          %v376 = vsel %vm344, %v310, 0.0
          %v377 = vsel %vm345, %v311, 0.0
          %v378 = vsel %vm346, %v312, 0.0
          %vm379 = vcmp.eq.f32.partialorder %v363, %v371
          %vm380 = vcmp.eq.f32.partialorder %v364, %v372
          %vm381 = vcmp.eq.f32.partialorder %v365, %v373
          %vm382 = vcmp.eq.f32.partialorder %v366, %v374
          %vm383 = vcmp.eq.f32.partialorder %v367, %v375
          %vm384 = vcmp.eq.f32.partialorder %v368, %v376
          %vm385 = vcmp.eq.f32.partialorder %v369, %v377
          %vm386 = vcmp.eq.f32.partialorder %v370, %v378
          %vm387 = vmand %vm339, %vm379
          %vm388 = vmand %vm340, %vm380
          %vm389 = vmand %vm341, %vm381
          %vm390 = vmand %vm342, %vm382
          %vm391 = vmand %vm343, %vm383
          %vm392 = vmand %vm344, %vm384
          %vm393 = vmand %vm345, %vm385
          %vm394 = vmand %vm346, %vm386
          %v395 = vsel %vm387, 1.0, 0.0
          %v396 = vsel %vm388, 1.0, 0.0
          %v397 = vsel %vm389, 1.0, 0.0
          %v398 = vsel %vm390, 1.0, 0.0
          %v399 = vsel %vm391, 1.0, 0.0
          %v400 = vsel %vm392, 1.0, 0.0
          %v401 = vsel %vm393, 1.0, 0.0
          %v402 = vsel %vm394, 1.0, 0.0
          %v403 = vsel %vm347, %v371, 0.0
          %v404 = vsel %vm348, %v372, 0.0
          %v405 = vsel %vm349, %v373, 0.0
          %v406 = vsel %vm350, %v374, 0.0
          %v407 = vsel %vm351, %v375, 0.0
          %v408 = vsel %vm352, %v376, 0.0
          %v409 = vsel %vm353, %v377, 0.0
          %v410 = vsel %vm354, %v378, 0.0
          %v411 = vadd.f32 %v403, %v404
          %v412 = vadd.f32 %v411, %v405
          %v413 = vadd.f32 %v412, %v406
          %v414 = vadd.f32 %v413, %v407
          %v415 = vadd.f32 %v414, %v408
          %v416 = vadd.f32 %v415, %v409
          %v417 = vadd.f32 %v416, %v410
          %v418 = vadd.f32 %v290, %v417
          %v419 = vadd.f32 %v363, %v364
          %v420 = vadd.f32 %v419, %v365
          %v421 = vadd.f32 %v420, %v366
          %v422 = vadd.f32 %v421, %v367
          %v423 = vadd.f32 %v422, %v368
          %v424 = vadd.f32 %v423, %v369
          %v425 = vadd.f32 %v424, %v370
          %v426 = vadd.f32 %v291, %v425
          %v427 = vadd.f32 %v371, %v372
          %v428 = vadd.f32 %v427, %v373
          %v429 = vadd.f32 %v428, %v374
          %v430 = vadd.f32 %v429, %v375
          %v431 = vadd.f32 %v430, %v376
          %v432 = vadd.f32 %v431, %v377
          %v433 = vadd.f32 %v432, %v378
          %v434 = vadd.f32 %v292, %v433
          %v435 = vadd.f32 %v395, %v396
          %v436 = vadd.f32 %v435, %v397
          %v437 = vadd.f32 %v436, %v398
          %v438 = vadd.f32 %v437, %v399
          %v439 = vadd.f32 %v438, %v400
          %v440 = vadd.f32 %v439, %v401
          %v441 = vadd.f32 %v440, %v402
          %v442 = vadd.f32 %v293, %v441
        $region45: #{tpu_custom_call.1} parent=27 // loop_footer
          %s289 = sadd.s32 1, %s285
        $region46: #{tpu_custom_call.1} parent=27 // loop_footer_branch
          %284 = sbr.rel target = $region42
        $region47: #{tpu_custom_call.1} parent=27 // loop_exit
          _
        %v443 = vld [vmem:[%s243] sm:$0xff]
        %v444 = vadd.f32 %v443, %v290
        %445 = vst [vmem:[%s243] sm:$0xff] %v444
        %s446 = scalar_lea.vmem %s243, 8 [#allocation7]
        %v447 = vld [vmem:[%s446] sm:$0xff]
        %v448 = vadd.f32 %v447, %v291
        %449 = vst [vmem:[%s446] sm:$0xff] %v448
        %s450 = scalar_lea.vmem %s243, 16 [#allocation7]
        %v451 = vld [vmem:[%s450] sm:$0xff]
        %v452 = vadd.f32 %v451, %v292
        %453 = vst [vmem:[%s450] sm:$0xff] %v452
        %s454 = scalar_lea.vmem %s243, 24 [#allocation7]
        %v455 = vld [vmem:[%s454] sm:$0xff]
        %v456 = vadd.f32 %v455, %v293
        %457 = vst [vmem:[%s454] sm:$0xff] %v456
        %s458 = sand.u32 %s106, 1
        %s459 = scalar_lea.sflag [#allocation4], %s458
        %s460 = sand.u32 %s106, 1
        %s461 = smul.addr %s460, 32
        %s462 = scalar_lea.vmem [#allocation7], %s461
        // Predicated region
        $region48: #{tpu_custom_call.1} parent=27 // pred_check
          %p463 = pneg %p116
        $region49: #{tpu_custom_call.1} parent=27 // pred_check_branch
          %465 = sbr.rel (%p463) target = $region51
        $region50: #{tpu_custom_call.1} parent=27 // pred_region
          %s467 = ssub.s32 512, 512
          %468 = vsyncadd %s459, %s467
          %s469 = smul.addr %s26, 4
          %s470 = smul.addr %s469, 128
          %s471 = scalar_lea.hbm %s2, %s470
          %s472 = sshll.u32 %s462, 4
          %s473 = int_to_ptr.vmem [resolvable:$true] %s472
          %478 = dma.vmem_to_hbm [thread:$0]  %s473, 512, %s471, %s459, 128, 128, 8
        $region51: #{tpu_custom_call.1} parent=27 // pred_fallthru
          _
      $region28: #{tpu_custom_call.1} parent=5 // pred_fallthru
        _
      %p479 = scmp.le.s32.totalorder 2, %s17
      // Predicated region
      $region52: #{tpu_custom_call.1} parent=5 // pred_check
        %p480 = pneg %p479
      $region53: #{tpu_custom_call.1} parent=5 // pred_check_branch
        %482 = sbr.rel (%p480) target = $region55
      $region54: #{tpu_custom_call.1} parent=5 // pred_region
        %s483 = ssub.s32 %s17, 2
        // Predicated region
        $region56: #{tpu_custom_call.1} parent=54 // pred_check
          %p484 = pneg %p122
        $region57: #{tpu_custom_call.1} parent=54 // pred_check_branch
          %486 = sbr.rel (%p484) target = $region59
        $region58: #{tpu_custom_call.1} parent=54 // pred_region
          %s487 = sand.u32 %s107, 1
          %s488 = scalar_lea.sflag [#allocation4], %s487
          %s489 = sand.u32 %s107, 1
          %s490 = smul.addr %s489, 32
          %s491 = scalar_lea.vmem [#allocation7], %s490
          %492 = dma.done %s488, 512
        $region59: #{tpu_custom_call.1} parent=54 // pred_fallthru
          _
      $region55: #{tpu_custom_call.1} parent=5 // pred_fallthru
        _
    $region6: #{tpu_custom_call.1} parent=1 // loop_footer
      %s21 = sadd.s32 1, %s17
    $region7: #{tpu_custom_call.1} parent=1 // loop_footer_branch
      %16 = sbr.rel target = $region3
    $region8: #{tpu_custom_call.1} parent=1 // loop_exit
      _
    %493 = vsyncpa [#allocation3], 1
    %s494 = scalar_lea.sflag [#allocation3], 1
    %495 = vsyncpa %s494, 1
    %496 = vsyncpa [#allocation6], 1
    %s497 = scalar_lea.sflag [#allocation6], 1
    %498 = vsyncpa %s497, 1
    %499 = vsyncpa [#allocation4], 1
    %s500 = scalar_lea.sflag [#allocation4], 1
    %501 = vsyncpa %s500, 1

</llo_original>
